<compile_context>
chip_gen: v7x
topology: tpu7x:2x2x1
jax: 0.10.0
libtpu: 0.0.40
codegen_flags: <defaults>
</compile_context>

<pallas_src>
import functools

import jax
import jax.numpy as jnp
from jax import lax
from jax.experimental import pallas as pl
from jax.experimental.pallas import tpu as pltpu


_VMEM_LIMIT_BYTES = 48 * 1024 * 1024  # safe on v5e/v6e (128 MiB) and v7x (64 MiB)


def _choose_tk(K, M, itemsize, budget_bytes=4 * 1024 * 1024):
    """Largest K tile that is a multiple of 128, divides K, and fits a per-buffer budget."""
    if K % 128 != 0:
        return K  # fall back to a single full-K block (small / irregular shapes)
    tk = (budget_bytes // max(M * itemsize, 1)) // 128 * 128
    tk = max(128, min(K, tk))
    while K % tk != 0:
        tk -= 128
    return tk


def _gram_kernel(x_ref, g_ref, acc_ref, *, inv_denom):
    """Accumulate F @ F.T over K tiles; write scaled Gram at the last step."""
    k = pl.program_id(0)

    @pl.when(k == 0)
    def _init():
        acc_ref[...] = jnp.zeros_like(acc_ref)

    x = x_ref[...]
    # NT matmul: contract dim 1 of both operands (no explicit transpose).
    acc_ref[...] += lax.dot_general(
        x, x,
        dimension_numbers=(((1,), (1,)), ((), ())),
        preferred_element_type=jnp.float32,
    )

    @pl.when(k == pl.num_programs(0) - 1)
    def _finalize():
        g_ref[...] = acc_ref[...] * inv_denom


def _loss_kernel(x_ref, tgt_ref, loss_ref, acc_ref, *, inv_denom_gram, inv_denom_mse):
    """Accumulate Gram over K tiles; finalize scale + MSE vs target into a scalar."""
    k = pl.program_id(0)

    @pl.when(k == 0)
    def _init():
        acc_ref[...] = jnp.zeros_like(acc_ref)

    x = x_ref[...]
    acc_ref[...] += lax.dot_general(
        x, x,
        dimension_numbers=(((1,), (1,)), ((), ())),
        preferred_element_type=jnp.float32,
    )

    @pl.when(k == pl.num_programs(0) - 1)
    def _finalize():
        g = acc_ref[...] * inv_denom_gram
        d = g - tgt_ref[...]
        loss_ref[0, 0] = jnp.sum(d * d) * inv_denom_mse


def _gram_pallas(features, denom):
    """Gram matrix of a (M, K) feature matrix, scaled by 1/denom. Returns f32 (M, M)."""
    M, K = features.shape
    tk = _choose_tk(K, M, features.dtype.itemsize)
    kernel = functools.partial(_gram_kernel, inv_denom=1.0 / float(denom))
    return pl.pallas_call(
        kernel,
        grid=(K // tk,),
        in_specs=[pl.BlockSpec((M, tk), lambda k: (0, k))],
        out_specs=pl.BlockSpec((M, M), lambda k: (0, 0)),
        out_shape=jax.ShapeDtypeStruct((M, M), jnp.float32),
        scratch_shapes=[pltpu.VMEM((M, M), jnp.float32)],
        compiler_params=pltpu.CompilerParams(
            dimension_semantics=("arbitrary",),
            vmem_limit_bytes=_VMEM_LIMIT_BYTES,
        ),
        cost_estimate=pl.CostEstimate(
            flops=2 * M * M * K,
            transcendentals=0,
            bytes_accessed=M * K * features.dtype.itemsize + M * M * 4,
        ),
    )(features)


def _style_loss_pallas(features, target_gram, denom_gram):
    """MSE(Gram(features)/denom_gram, target_gram); Gram stays in VMEM only."""
    M, K = features.shape
    tk = _choose_tk(K, M, features.dtype.itemsize)
    kernel = functools.partial(
        _loss_kernel,
        inv_denom_gram=1.0 / float(denom_gram),
        inv_denom_mse=1.0 / float(M * M),
    )
    loss = pl.pallas_call(
        kernel,
        grid=(K // tk,),
        in_specs=[
            pl.BlockSpec((M, tk), lambda k: (0, k)),
            # Constant block index -> target Gram is fetched once and stays resident.
            pl.BlockSpec((M, M), lambda k: (0, 0)),
        ],
        # Scalar loss goes out through SMEM (no masked 1-lane VMEM store).
        out_specs=pl.BlockSpec(memory_space=pltpu.MemorySpace.SMEM),
        out_shape=jax.ShapeDtypeStruct((1, 1), jnp.float32),
        scratch_shapes=[pltpu.VMEM((M, M), jnp.float32)],
        compiler_params=pltpu.CompilerParams(
            dimension_semantics=("arbitrary",),
            vmem_limit_bytes=_VMEM_LIMIT_BYTES,
        ),
        cost_estimate=pl.CostEstimate(
            flops=2 * M * M * K + 3 * M * M,
            transcendentals=0,
            bytes_accessed=M * K * features.dtype.itemsize + M * M * 4 + 4,
        ),
    )(features, target_gram)
    return loss[0, 0]


def gram_matrix(inputs, feature_dtype=jnp.bfloat16):
    """Gram matrix of an NCHW tensor (matches the PyTorch helper)."""
    a, b, c, d = inputs.shape
    features = inputs.reshape(a * b, c * d).astype(feature_dtype)
    return _gram_pallas(features, denom=a * b * c * d)


class StyleLoss:
    """JAX/Pallas equivalent of the PyTorch StyleLoss module."""

    def __init__(self, target_feature, feature_dtype=jnp.bfloat16):
        self.feature_dtype = feature_dtype
        # Target Gram is "detached" by construction (plain array, no grads tracked).
        self.target = gram_matrix(target_feature, feature_dtype)
        self.loss = None

    def __call__(self, inputs):
        a, b, c, d = inputs.shape
        features = inputs.reshape(a * b, c * d).astype(self.feature_dtype)
        self.loss = _style_loss_pallas(features, self.target, denom_gram=a * b * c * d)
        return inputs


if __name__ == "__main__":
    key = jax.random.PRNGKey(0)
    k_tgt, k_in = jax.random.split(key)

    # Small NCHW shapes: batch=2, channels=4, spatial=16x16 -> M=8, K=256.
    target_feature = jax.random.normal(k_tgt, (2, 4, 16, 16), dtype=jnp.float32)
    x = jax.random.normal(k_in, (2, 4, 16, 16), dtype=jnp.float32)

    style = StyleLoss(target_feature)
    out = style(x)

    out = jax.block_until_ready(out)
    loss = jax.block_until_ready(style.loss)

    # Plain-JAX reference with the same bf16 feature quantization as the kernel
    # (products are exact in f32 either way; only accumulation order differs).
    def _ref_gram(t):
        a, b, c, d = t.shape
        f = t.reshape(a * b, c * d).astype(jnp.bfloat16).astype(jnp.float32)
        return (f @ f.T) / float(a * b * c * d)

    g_x = _ref_gram(x)
    g_t = _ref_gram(target_feature)
    loss_ref = jnp.mean((g_x - g_t) ** 2)

    assert jnp.allclose(out, x), "forward must return inputs unchanged"
    assert jnp.allclose(style.target, g_t, rtol=1e-3, atol=1e-5), "target Gram mismatch"
    assert jnp.allclose(loss, loss_ref, rtol=1e-3, atol=1e-6), (loss, loss_ref)

    print("KERNEL_OK")
</pallas_src>

<mosaic_0001>
module attributes {stable_mosaic.version = 11 : i64} {
  func.func @_gram_kernel(%arg0: i32, %arg1: memref<8x256xbf16, #tpu.memory_space<vmem>>, %arg2: memref<8x8xf32, #tpu.memory_space<vmem>>, %arg3: memref<8x8xf32, #tpu.memory_space<vmem>>) attributes {dimension_semantics = [#tpu.dimension_semantics<arbitrary>], iteration_bounds = array<i64: 1>, scalar_prefetch = 0 : i64, scratch_operands = 1 : i64, tpu.core_type = #tpu.core_type<tc>, window_params = [{transform_indices = @transform_0, window_bounds = array<i64: 8, 256>}, {pipeline_mode = #tpu.pipeline_mode<synchronous>, transform_indices = @transform_1, window_bounds = array<i64: 8, 8>}]} {
    %c0_i32 = arith.constant 0 : i32
    %0 = arith.cmpi eq, %arg0, %c0_i32 : i32
    %1 = arith.extui %0 : i1 to i32
    %c0_i32_0 = arith.constant 0 : i32
    %2 = arith.cmpi ne, %1, %c0_i32_0 : i32
    scf.if %2 {
      %cst_8 = arith.constant 0.000000e+00 : f32
      %11 = vector.broadcast %cst_8 : f32 to vector<8x8xf32>
      %c0_9 = arith.constant 0 : index
      %c0_10 = arith.constant 0 : index
      %12 = vector.load %arg3[%c0_9, %c0_10] : memref<8x8xf32, #tpu.memory_space<vmem>>, vector<8x8xf32>
      tpu.vector_store %arg3[%c0_9, %c0_10], %11 {strides = array<i32>} : memref<8x8xf32, #tpu.memory_space<vmem>>, vector<8x8xf32>,
    } else {
    }
    %c0 = arith.constant 0 : index
    %c0_1 = arith.constant 0 : index
    %3 = vector.load %arg1[%c0, %c0_1] : memref<8x256xbf16, #tpu.memory_space<vmem>>, vector<8x256xbf16>
    %c0_2 = arith.constant 0 : index
    %c0_3 = arith.constant 0 : index
    %4 = vector.load %arg3[%c0_2, %c0_3] : memref<8x8xf32, #tpu.memory_space<vmem>>, vector<8x8xf32>
    %cst = arith.constant dense<0.000000e+00> : vector<8x8xf32>
    %5 = tpu.matmul %3, %3, %cst {dimension_numbers = #tpu.dot_dimension_numbers<[1], [1], [0], [0], [0, 0, 1, 0], [], []>} : vector<8x256xbf16>, vector<8x256xbf16>, vector<8x8xf32> -> vector<8x8xf32>
    %6 = arith.addf %4, %5 : vector<8x8xf32>
    %c0_4 = arith.constant 0 : index
    %c0_5 = arith.constant 0 : index
    %7 = vector.load %arg3[%c0_4, %c0_5] : memref<8x8xf32, #tpu.memory_space<vmem>>, vector<8x8xf32>
    tpu.vector_store %arg3[%c0_4, %c0_5], %6 {strides = array<i32>} : memref<8x8xf32, #tpu.memory_space<vmem>>, vector<8x8xf32>,
    %c0_i32_6 = arith.constant 0 : i32
    %8 = arith.cmpi eq, %arg0, %c0_i32_6 : i32
    %9 = arith.extui %8 : i1 to i32
    %c0_i32_7 = arith.constant 0 : i32
    %10 = arith.cmpi ne, %9, %c0_i32_7 : i32
    scf.if %10 {
      %c0_8 = arith.constant 0 : index
      %c0_9 = arith.constant 0 : index
      %11 = vector.load %arg3[%c0_8, %c0_9] : memref<8x8xf32, #tpu.memory_space<vmem>>, vector<8x8xf32>
      %cst_10 = arith.constant 4.8828125E-4 : f32
      %12 = vector.broadcast %cst_10 : f32 to vector<8x8xf32>
      %13 = arith.mulf %11, %12 : vector<8x8xf32>
      %c0_11 = arith.constant 0 : index
      %c0_12 = arith.constant 0 : index
      %14 = vector.load %arg2[%c0_11, %c0_12] : memref<8x8xf32, #tpu.memory_space<vmem>>, vector<8x8xf32>
      tpu.vector_store %arg2[%c0_11, %c0_12], %13 {strides = array<i32>} : memref<8x8xf32, #tpu.memory_space<vmem>>, vector<8x8xf32>,
    } else {
    }
    return
  }
  func.func @transform_0(%arg0: i32) -> (i32, i32) {
    %c0_i32 = arith.constant 0 : i32
    %c0_i32_0 = arith.constant 0 : i32
    return %c0_i32, %arg0 : i32, i32
  }
  func.func @transform_1(%arg0: i32) -> (i32, i32) {
    %c0_i32 = arith.constant 0 : i32
    %c0_i32_0 = arith.constant 0 : i32
    %c0_i32_1 = arith.constant 0 : i32
    return %c0_i32, %c0_i32_0 : i32, i32
  }
}

</mosaic_0001>

<llo_original>
// kernel: tpu_custom_call.1
$region0: #{tpu_custom_call.1}
  #allocation0 [shape = 'u32[]', space=smem, size = 0x4, offset = 0x4, fixed_abs, tag = 'smem constant byte address 0x4 - core index']
  #allocation1 [shape = 'u32[144,128]{1,0:T(1,128)}', space=vmem, size = 0x12000, scoped, tag = 'internal scratch']
  #allocation2 [shape = 'f32[8,8]{1,0:T(8,128)}', space=vmem, size = 0x1000, scoped, tag = 'scratch operand']
  %s0 = inlined_call_operand.hbm [shape: bf16[8,256], index: 0, kind: input, shape index: {}]
  %s1 = inlined_call_operand.hbm [shape: f32[8,8], index: 1, kind: output, shape index: {}]
  %s2 = sld [smem:[#allocation0]]
  $region26: #{tpu_custom_call.1} parent=0
    _
  %s4 = ssub.s32 1, %s2
  %s5 = scalar_select 0, %s4, %s2
  $region1: #{tpu_custom_call.1} parent=0
    #allocation3 [shape = 'u8[4096]{0}', space=vmem, size = 0x1000, scoped, tag = 'input window, operand 0, single buffered']
    #allocation4 [shape = 's32[1]{0}', space=sflag, size = 0x4, scoped, tag = 'scoped memory for tpu_custom_call.1']
    #allocation5 [shape = 's32[1]{0}', space=sflag, size = 0x4, scoped, tag = 'scoped memory for tpu_custom_call.1']
    #allocation6 [shape = 'u8[4096]{0}', space=vmem, size = 0x1000, scoped, tag = 'output window, operand 0, single buffered']
    %6 = vsyncpa [#allocation4], 0
    %7 = vsyncpa [#allocation5], 0
    // Predicated region
    $region2: #{tpu_custom_call.1} parent=1 // pred_check
      _
    $region3: #{tpu_custom_call.1} parent=1 // pred_check_branch
      %9 = sbr.rel (0) target = $region5
    $region4: #{tpu_custom_call.1} parent=1 // pred_region
      %s11 = ssub.s32 128, 128
      %12 = vsyncadd [#allocation4], %s11
      %s14 = sshll.u32 [#allocation3], 4
      %s15 = int_to_ptr.vmem [resolvable:$true] %s14
      %17 = dma.hbm_to_vmem [thread:$0]  %s0, 128, %s15, [#allocation4]
    $region5: #{tpu_custom_call.1} parent=1 // pred_fallthru
      _
    // Predicated region
    $region6: #{tpu_custom_call.1} parent=1 // pred_check
      _
    $region7: #{tpu_custom_call.1} parent=1 // pred_check_branch
      %19 = sbr.rel (0) target = $region9
    $region8: #{tpu_custom_call.1} parent=1 // pred_region
      %20 = dma.done [#allocation4], 128
    $region9: #{tpu_custom_call.1} parent=1 // pred_fallthru
      _
    %p22 = scmp.eq.s32.totalorder 0, 0
    // Predicated region
    $region10: #{tpu_custom_call.1} parent=1 // pred_check
      %p23 = pneg %p22
    $region11: #{tpu_custom_call.1} parent=1 // pred_check_branch
      %25 = sbr.rel (%p23) target = $region13
    $region12: #{tpu_custom_call.1} parent=1 // pred_region
      %vm26 = vcmask 64512
      %27 = vst.msk [vmem:[#allocation2] sm:$0xff] %vm26, 0.0
    $region13: #{tpu_custom_call.1} parent=1 // pred_fallthru
      _
    %v28 = vld [vmem:[#allocation3] sm:$0xff]
    %v29 = vld [vmem:[#allocation2] sm:$0xff]
    %v31 = vunpack.c.l.b16 %v28
    %v32 = vunpack.c.h.b16 %v28
    %v33 = vpack.c.b16 %v31, %v31
    %v34 = vpack.c.b16 %v32, %v32
    %37 = vmatprep.subr.bf16.mxu0 %v34
    %38 = vmatpush1.bf16.xpose.msra.mxu0 %v33
    %39 = vmatprep.subr.bf16.mxu0 0
    %40 = vmatpush1.bf16.xpose.msra.mxu0 0
    %41 = vmatprep.subr.bf16.mxu0 0
    %42 = vmatpush1.bf16.xpose.msra.mxu0 0
    %43 = vmatprep.subr.bf16.mxu0 0
    %44 = vmatpush1.bf16.xpose.msra.mxu0 0
    %45 = vmatprep.subr.bf16.mxu0 0
    %46 = vmatpush1.bf16.xpose.msra.mxu0 0
    %47 = vmatprep.subr.bf16.mxu0 0
    %48 = vmatpush1.bf16.xpose.msra.mxu0 0
    %49 = vmatprep.subr.bf16.mxu0 0
    %50 = vmatpush1.bf16.xpose.msra.mxu0 0
    %51 = vmatprep.subr.bf16.mxu0 0
    %52 = vmatpush1.bf16.xpose.msra.mxu0 0
    %53 = vmatprep.subr.bf16.mxu0 0
    %54 = vmatpush1.bf16.xpose.msra.mxu0 0
    %55 = vmatprep.subr.bf16.mxu0 0
    %56 = vmatpush1.bf16.xpose.msra.mxu0 0
    %57 = vmatprep.subr.bf16.mxu0 0
    %58 = vmatpush1.bf16.xpose.msra.mxu0 0
    %59 = vmatprep.subr.bf16.mxu0 0
    %60 = vmatpush1.bf16.xpose.msra.mxu0 0
    %61 = vmatprep.subr.bf16.mxu0 0
    %62 = vmatpush1.bf16.xpose.msra.mxu0 0
    %63 = vmatprep.subr.bf16.mxu0 0
    %64 = vmatpush1.bf16.xpose.msra.mxu0 0
    %65 = vmatprep.subr.bf16.mxu0 0
    %66 = vmatpush1.bf16.xpose.msra.mxu0 0
    %67 = vmatprep.subr.bf16.mxu0 0
    %68 = vmatpush1.bf16.xpose.msra.mxu0 0
    %69 = vmatprep.mubr.bf16.mxu0 %v34
    %70 = vmatmul.mubr.bf16.gmra.mrb[0].mxu0 %v33
    %v71 = vpop.f32.mrb[0].mxu0
    %v72 = vadd.f32 0.0, %v71
    %v73 = vpop.f32.mrb[0].mxu0
    %v74 = vpop.f32.mrb[0].mxu0
    %v75 = vpop.f32.mrb[0].mxu0
    %76 = vdwg.mxu0
    %v77 = vadd.f32 %v29, %v72
    %vm78 = vcmask 64512
    %79 = vst.msk [vmem:[#allocation2] sm:$0xff] %vm78, %v77
    // Predicated region
    $region14: #{tpu_custom_call.1} parent=1 // pred_check
      %p80 = pneg %p22
    $region15: #{tpu_custom_call.1} parent=1 // pred_check_branch
      %82 = sbr.rel (%p80) target = $region17
    $region16: #{tpu_custom_call.1} parent=1 // pred_region
      %v83 = vld [vmem:[#allocation2] sm:$0xff]
      %v84 = vmul.f32 %v83, 0.00048828125
      %85 = vst.msk [vmem:[#allocation6] sm:$0xff] %vm78, %v84
    $region17: #{tpu_custom_call.1} parent=1 // pred_fallthru
      _
    // Predicated region
    $region18: #{tpu_custom_call.1} parent=1 // pred_check
      _
    $region19: #{tpu_custom_call.1} parent=1 // pred_check_branch
      %87 = sbr.rel (0) target = $region21
    $region20: #{tpu_custom_call.1} parent=1 // pred_region
      %s89 = ssub.s32 128, 128
      %90 = vsyncadd [#allocation5], %s89
      %s92 = sshll.u32 [#allocation6], 4
      %s93 = int_to_ptr.vmem [resolvable:$true] %s92
      %95 = dma.vmem_to_hbm [thread:$0]  %s93, 128, %s1, [#allocation5]
    $region21: #{tpu_custom_call.1} parent=1 // pred_fallthru
      _
    // Predicated region
    $region22: #{tpu_custom_call.1} parent=1 // pred_check
      _
    $region23: #{tpu_custom_call.1} parent=1 // pred_check_branch
      %97 = sbr.rel (0) target = $region25
    $region24: #{tpu_custom_call.1} parent=1 // pred_region
      %98 = dma.done [#allocation5], 128
    $region25: #{tpu_custom_call.1} parent=1 // pred_fallthru
      _
    %99 = vsyncpa [#allocation4], 1
    %100 = vsyncpa [#allocation5], 1

</llo_original>
